<compile_context>
chip_gen: v5e
topology: v5e:2x2
jax: 0.10.0
libtpu: 0.0.40
codegen_flags: <defaults>
</compile_context>

<pallas_src>
import functools
import math

import jax
import jax.numpy as jnp
from jax.experimental import pallas as pl
from jax.experimental.pallas import tpu as pltpu

_LOG_PROB_MIN = math.log(1e-4)   # log of the prob.clamp(min=0.0001) floor


def _focal_loss_kernel(*refs, gamma, use_alpha, use_labels, n_rows, ragged):
    it = iter(refs)
    y_pred_ref = next(it)
    tgt_ref = next(it)
    alpha_ref = next(it) if use_alpha else None
    out_ref = next(it)

    logits = y_pred_ref[...].astype(jnp.float32)          # (TILE, C)
    tile_rows, n_cls = logits.shape

    valid = None
    if ragged:
        row0 = pl.program_id(0) * tile_rows
        row_ids = row0 + jax.lax.broadcasted_iota(jnp.int32, (tile_rows, 1), 0)
        valid = row_ids < n_rows                           # (TILE, 1)
        # Rows past N in the boundary block hold unspecified data; zero the
        # logits so the math below stays finite (their loss is masked via the
        # target anyway).
        logits = jnp.where(valid, logits, 0.0)

    if use_labels:
        labels = tgt_ref[...]                              # (TILE, 1) int32
        if ragged:
            labels = jnp.where(valid, labels, -1)
        cls_ids = jax.lax.broadcasted_iota(jnp.int32, (tile_rows, n_cls), 1)
        target = (cls_ids == labels).astype(jnp.float32)   # in-kernel one-hot
    else:
        target = tgt_ref[...].astype(jnp.float32)          # (TILE, C)
        if ragged:
            target = jnp.where(valid, target, 0.0)

    # Numerically-stable softmax / log-softmax over the class axis (dim=1).
    m = jnp.max(logits, axis=1, keepdims=True)
    shifted = logits - m
    e = jnp.exp(shifted)
    denom = jnp.sum(e, axis=1, keepdims=True)
    prob = e * pl.reciprocal(denom, approx=True)           # EUP vrcp, ~free
    prob = jnp.clip(prob, 0.0001, 1.0)                     # prob.clamp(1e-4, 1)
    # log(prob.clamp(...)) via the identity: only a (TILE, 1) log on the EUP.
    log_prob = jnp.clip(shifted - jnp.log(denom), _LOG_PROB_MIN, 0.0)

    # (1 - prob)^gamma: explicit multiplies for integer gamma (keeps the
    # single EUP slot free for the exp); pow fallback otherwise.
    omp = 1.0 - prob
    if float(gamma) == float(int(gamma)) and int(gamma) >= 0:
        pw = jnp.ones_like(prob)
        for _ in range(int(gamma)):
            pw = pw * omp
    else:
        pw = jnp.power(omp, jnp.float32(gamma))

    # -(alpha) * (1 - prob)^gamma * log(prob) * target
    focal = -pw * log_prob * target
    if use_alpha:
        focal = focal * alpha_ref[...].astype(jnp.float32)  # (1, C) broadcast

    # Per-block partial sum written to a lane-dense (1, 8, 128) block; the
    # tiny cross-block reduction happens in the wrapper so the grid axis
    # stays fully parallel (megacore-friendly, no serializing RMW).
    out_ref[...] = jnp.sum(focal) + jnp.zeros((1, 8, 128), jnp.float32)


def _round_up(x, m):
    return ((x + m - 1) // m) * m


def _vmem_capacity_bytes():
    try:
        info = pltpu.get_tpu_info()
        cap = getattr(info, "vmem_capacity_bytes", None)
        if cap:
            return int(cap)
    except Exception:
        pass
    return 64 * 1024 * 1024          # conservative (v7x-sized) fallback


def _pick_row_tile(n_rows, per_row_bytes, sublane, vmem_bytes, requested=None):
    if requested is not None:
        tile = int(requested)
    else:
        # Memory-bound kernel: largest row tile whose working set fits in
        # roughly half of this generation's physical VMEM (headroom for the
        # pipeline and Mosaic's own scratch).
        budget = vmem_bytes // 2
        tile = max(sublane, min(budget // max(per_row_bytes, 1), 65536))
    tile = min(tile, _round_up(n_rows, sublane))
    # Keep at least two grid steps when there is enough work so the
    # "parallel" grid axis can shard across v7x's two TensorCores.
    if n_rows > 2 * sublane:
        tile = min(tile, _round_up((n_rows + 1) // 2, sublane))
    tile = max(sublane, (tile // sublane) * sublane)
    return tile


def focal_loss(y_pred, y_true, *, class_num, gamma=2, use_alpha=False,
               alpha=None, size_average=True, row_tile=None):
    """Pallas implementation of FocalLoss.forward.

    y_pred: (..., class_num) logits, f32 or bf16 (flattened to (N, class_num)).
    y_true: dense (..., class_num) one-hot / soft targets, OR int labels (N,)
            (fast path; the one-hot is materialised in-kernel).
    Returns a scalar float32 loss.
    """
    y_pred = jnp.reshape(jnp.asarray(y_pred), (-1, class_num))
    n_rows, n_cls = y_pred.shape

    y_true = jnp.asarray(y_true)
    use_labels = jnp.issubdtype(y_true.dtype, jnp.integer)
    if use_labels:
        y_true = jnp.reshape(y_true, (-1, 1)).astype(jnp.int32)
        assert y_true.shape[0] == n_rows
    else:
        y_true = jnp.reshape(y_true, (-1, class_num))
        assert y_true.shape == (n_rows, n_cls)

    pred_bytes = jnp.dtype(y_pred.dtype).itemsize
    tgt_bytes = 0 if use_labels else jnp.dtype(y_true.dtype).itemsize
    min_itemsize = min([pred_bytes] + ([] if use_labels else [tgt_bytes]))
    sublane = {4: 8, 2: 16, 1: 32}.get(min_itemsize, 8)

    # Working set per row: double-buffered input streams + ~6 full-tile f32
    # temporaries inside the kernel body (casts, e, prob, log_prob, pw, focal).
    per_row_bytes = (2 * (n_cls * pred_bytes + (4 if use_labels else n_cls * tgt_bytes))
                     + 6 * n_cls * 4)

    vmem_bytes = _vmem_capacity_bytes()
    vmem_limit = min(vmem_bytes * 3 // 4, 96 * 1024 * 1024)

    tile = _pick_row_tile(n_rows, per_row_bytes, sublane, vmem_bytes, row_tile)
    n_blocks = -(-n_rows // tile)
    ragged = (n_rows % tile) != 0

    in_specs = [pl.BlockSpec((tile, n_cls), lambda i: (i, 0))]
    args = [y_pred]
    if use_labels:
        in_specs.append(pl.BlockSpec((tile, 1), lambda i: (i, 0)))
    else:
        in_specs.append(pl.BlockSpec((tile, n_cls), lambda i: (i, 0)))
    args.append(y_true)
    if use_alpha:
        alpha_arr = jnp.asarray(alpha, dtype=jnp.float32).reshape(1, n_cls)
        in_specs.append(pl.BlockSpec((1, n_cls), lambda i: (0, 0)))
        args.append(alpha_arr)

    kernel = functools.partial(
        _focal_loss_kernel, gamma=gamma, use_alpha=use_alpha,
        use_labels=bool(use_labels), n_rows=n_rows, ragged=ragged)

    partials = pl.pallas_call(
        kernel,
        out_shape=jax.ShapeDtypeStruct((n_blocks, 8, 128), jnp.float32),
        grid_spec=pltpu.PrefetchScalarGridSpec(
            num_scalar_prefetch=0,
            grid=(n_blocks,),
            in_specs=in_specs,
            out_specs=pl.BlockSpec((1, 8, 128), lambda i: (i, 0, 0)),
        ),
        compiler_params=pltpu.CompilerParams(
            dimension_semantics=("parallel",),
            vmem_limit_bytes=int(vmem_limit),
        ),
    )(*args)

    total = jnp.sum(partials[:, 0, 0])
    if size_average:
        return total / jnp.float32(n_rows)
    return total


def _reference_focal_loss(y_pred, y_true, *, class_num, gamma=2,
                          use_alpha=False, alpha=None, size_average=True):
    # Pure-JAX reference (float32) mirroring the PyTorch forward.
    p = jax.nn.softmax(jnp.reshape(y_pred, (-1, class_num)).astype(jnp.float32),
                       axis=1)
    p = jnp.clip(p, 0.0001, 1.0)
    t = jnp.reshape(y_true, (-1, class_num)).astype(jnp.float32)
    bl = -jnp.power(1.0 - p, gamma) * jnp.log(p) * t
    if use_alpha:
        bl = jnp.asarray(alpha, dtype=jnp.float32)[None, :] * bl
    bl = jnp.sum(bl, axis=1)
    return jnp.mean(bl) if size_average else jnp.sum(bl)


if __name__ == "__main__":
    CLASS_NUM = 32
    GAMMA = 2

    key = jax.random.PRNGKey(0)
    k1, k2, k3, k4, k5, k6 = jax.random.split(key, 6)

    # Case 1: dense one-hot targets, no alpha, size_average=True, N % 8 == 0.
    N1 = 16
    y_pred1 = jax.random.normal(k1, (N1, CLASS_NUM), dtype=jnp.float32)
    labels1 = jax.random.randint(k2, (N1,), 0, CLASS_NUM)
    y_true1 = jax.nn.one_hot(labels1, CLASS_NUM, dtype=jnp.float32)

    loss1 = jax.block_until_ready(
        focal_loss(y_pred1, y_true1, class_num=CLASS_NUM, gamma=GAMMA,
                   use_alpha=False, size_average=True))
    ref1 = jax.block_until_ready(
        _reference_focal_loss(y_pred1, y_true1, class_num=CLASS_NUM,
                              gamma=GAMMA, size_average=True))
    assert jnp.allclose(loss1, ref1, rtol=2e-3, atol=1e-5), (loss1, ref1)

    # Case 2: dense targets + alpha, size_average=False, ragged N (exercises
    # the in-kernel last-block mask and the >=2-block grid).
    N2 = 19
    y_pred2 = jax.random.normal(k3, (N2, CLASS_NUM), dtype=jnp.float32)
    labels2 = jax.random.randint(k4, (N2,), 0, CLASS_NUM)
    y_true2 = jax.nn.one_hot(labels2, CLASS_NUM, dtype=jnp.float32)
    alpha = jnp.linspace(0.25, 1.0, CLASS_NUM, dtype=jnp.float32)

    loss2 = jax.block_until_ready(
        focal_loss(y_pred2, y_true2, class_num=CLASS_NUM, gamma=GAMMA,
                   use_alpha=True, alpha=alpha, size_average=False))
    ref2 = jax.block_until_ready(
        _reference_focal_loss(y_pred2, y_true2, class_num=CLASS_NUM,
                              gamma=GAMMA, use_alpha=True, alpha=alpha,
                              size_average=False))
    assert jnp.allclose(loss2, ref2, rtol=2e-3, atol=1e-5), (loss2, ref2)

    # Case 3: integer-label fast path with bf16 logits, ragged N.
    N3 = 19
    y_pred3 = jax.random.normal(k5, (N3, CLASS_NUM), dtype=jnp.float32
                                ).astype(jnp.bfloat16)
    labels3 = jax.random.randint(k6, (N3,), 0, CLASS_NUM).astype(jnp.int32)
    y_true3 = jax.nn.one_hot(labels3, CLASS_NUM, dtype=jnp.float32)

    loss3 = jax.block_until_ready(
        focal_loss(y_pred3, labels3, class_num=CLASS_NUM, gamma=GAMMA,
                   use_alpha=False, size_average=True))
    ref3 = jax.block_until_ready(
        _reference_focal_loss(y_pred3.astype(jnp.float32), y_true3,
                              class_num=CLASS_NUM, gamma=GAMMA,
                              size_average=True))
    assert jnp.allclose(loss3, ref3, rtol=5e-3, atol=1e-5), (loss3, ref3)

    print("KERNEL_OK")
</pallas_src>

<mosaic_0001>
module attributes {stable_mosaic.version = 11 : i64} {
  func.func @_focal_loss_kernel(%arg0: i32, %arg1: memref<16x32xf32, #tpu.memory_space<vmem>>, %arg2: memref<16x32xf32, #tpu.memory_space<vmem>>, %arg3: memref<1x8x128xf32, #tpu.memory_space<vmem>>) attributes {dimension_semantics = [#tpu.dimension_semantics<parallel>], iteration_bounds = array<i64: 1>, scalar_prefetch = 0 : i64, scratch_operands = 0 : i64, tpu.core_type = #tpu.core_type<tc>, window_params = [{transform_indices = @transform_0, window_bounds = array<i64: 16, 32>}, {transform_indices = @transform_1, window_bounds = array<i64: 16, 32>}, {transform_indices = @transform_2, window_bounds = array<i64: 1, 8, 128>}]} {
    %c0 = arith.constant 0 : index
    %c0_0 = arith.constant 0 : index
    %0 = vector.load %arg1[%c0, %c0_0] : memref<16x32xf32, #tpu.memory_space<vmem>>, vector<16x32xf32>
    %c0_1 = arith.constant 0 : index
    %c0_2 = arith.constant 0 : index
    %1 = vector.load %arg2[%c0_1, %c0_2] : memref<16x32xf32, #tpu.memory_space<vmem>>, vector<16x32xf32>
    %cst = arith.constant dense<0xFF800000> : vector<16xf32>
    %2 = vector.multi_reduction <maximumf>, %0, %cst [1] : vector<16x32xf32> to vector<16xf32>
    %3 = vector.shape_cast %2 : vector<16xf32> to vector<16x1xf32>
    %4 = vector.broadcast %3 : vector<16x1xf32> to vector<16x32xf32>
    %5 = arith.subf %0, %4 : vector<16x32xf32>
    %6 = math.exp %5 : vector<16x32xf32>
    %cst_3 = arith.constant dense<0.000000e+00> : vector<16xf32>
    %7 = vector.multi_reduction <add>, %6, %cst_3 [1] : vector<16x32xf32> to vector<16xf32>
    %8 = vector.shape_cast %7 : vector<16xf32> to vector<16x1xf32>
    %9 = tpu.reciprocal %8 {approx = true} : vector<16x1xf32> -> vector<16x1xf32>
    %10 = vector.broadcast %9 : vector<16x1xf32> to vector<16x32xf32>
    %11 = arith.mulf %6, %10 : vector<16x32xf32>
    %cst_4 = arith.constant 9.99999974E-5 : f32
    %cst_5 = arith.constant 1.000000e+00 : f32
    %12 = vector.broadcast %cst_4 : f32 to vector<16x32xf32>
    %13 = arith.maximumf %12, %11 : vector<16x32xf32>
    %14 = vector.broadcast %cst_5 : f32 to vector<16x32xf32>
    %15 = arith.minimumf %14, %13 : vector<16x32xf32>
    %16 = math.log %8 : vector<16x1xf32>
    %17 = vector.broadcast %16 : vector<16x1xf32> to vector<16x32xf32>
    %18 = arith.subf %5, %17 : vector<16x32xf32>
    %cst_6 = arith.constant -9.21034049 : f32
    %cst_7 = arith.constant 0.000000e+00 : f32
    %19 = vector.broadcast %cst_6 : f32 to vector<16x32xf32>
    %20 = arith.maximumf %19, %18 : vector<16x32xf32>
    %21 = vector.broadcast %cst_7 : f32 to vector<16x32xf32>
    %22 = arith.minimumf %21, %20 : vector<16x32xf32>
    %cst_8 = arith.constant 1.000000e+00 : f32
    %23 = vector.broadcast %cst_8 : f32 to vector<16x32xf32>
    %24 = arith.subf %23, %15 : vector<16x32xf32>
    %cst_9 = arith.constant 1.000000e+00 : f32
    %25 = vector.broadcast %cst_9 : f32 to vector<16x32xf32>
    %26 = arith.mulf %25, %24 : vector<16x32xf32>
    %27 = arith.mulf %26, %24 : vector<16x32xf32>
    %cst_10 = arith.constant 0.000000e+00 : f32
    %28 = vector.broadcast %cst_10 : f32 to vector<16x32xf32>
    %29 = arith.subf %28, %27 : vector<16x32xf32>
    %30 = arith.mulf %29, %22 : vector<16x32xf32>
    %31 = arith.mulf %30, %1 : vector<16x32xf32>
    %32 = vector.shape_cast %31 : vector<16x32xf32> to vector<1x16x32xf32>
    %cst_11 = arith.constant dense<0.000000e+00> : vector<1xf32>
    %33 = vector.multi_reduction <add>, %32, %cst_11 [1, 2] : vector<1x16x32xf32> to vector<1xf32>
    %34 = vector.shape_cast %33 : vector<1xf32> to vector<1x1x1xf32>
    %35 = vector.extract %34[0, 0, 0] : f32 from vector<1x1x1xf32>
    %cst_12 = arith.constant 0.000000e+00 : f32
    %36 = vector.broadcast %cst_12 : f32 to vector<1x8x128xf32>
    %37 = vector.broadcast %35 : f32 to vector<1x8x128xf32>
    %38 = arith.addf %37, %36 : vector<1x8x128xf32>
    %c0_13 = arith.constant 0 : index
    %c0_14 = arith.constant 0 : index
    %c0_15 = arith.constant 0 : index
    %39 = vector.load %arg3[%c0_13, %c0_14, %c0_15] : memref<1x8x128xf32, #tpu.memory_space<vmem>>, vector<1x8x128xf32>
    tpu.vector_store %arg3[%c0_13, %c0_14, %c0_15], %38 {strides = array<i32>} : memref<1x8x128xf32, #tpu.memory_space<vmem>>, vector<1x8x128xf32>,
    return
  }
  func.func @transform_0(%arg0: i32) -> (i32, i32) {
    %c0_i32 = arith.constant 0 : i32
    %c0_i32_0 = arith.constant 0 : i32
    return %arg0, %c0_i32 : i32, i32
  }
  func.func @transform_1(%arg0: i32) -> (i32, i32) {
    %c0_i32 = arith.constant 0 : i32
    %c0_i32_0 = arith.constant 0 : i32
    return %arg0, %c0_i32 : i32, i32
  }
  func.func @transform_2(%arg0: i32) -> (i32, i32, i32) {
    %c0_i32 = arith.constant 0 : i32
    %c0_i32_0 = arith.constant 0 : i32
    %c0_i32_1 = arith.constant 0 : i32
    return %arg0, %c0_i32, %c0_i32_0 : i32, i32, i32
  }
}

</mosaic_0001>

<llo_original>
// kernel: tpu_custom_call.1
$region0: #{tpu_custom_call.1}
  #allocation0 [shape = 'u32[]', space=smem, size = 0x4, offset = 0x4, fixed_abs, tag = 'smem constant byte address 0x4 - core index']
  #allocation1 [shape = 'u32[72,128]{1,0:T(1,128)}', space=vmem, size = 0x9000, scoped, tag = 'internal scratch']
  %s0 = inlined_call_operand.hbm [shape: f32[16,32], index: 0, kind: input, shape index: {}]
  %s1 = inlined_call_operand.hbm [shape: f32[16,32], index: 1, kind: input, shape index: {}]
  %s2 = inlined_call_operand.hbm [shape: f32[1,8,128], index: 2, kind: output, shape index: {}]
  %s3 = sld [smem:[#allocation0]]
  $region26: #{tpu_custom_call.1} parent=0
    _
  %s5 = ssub.s32 1, %s3
  %s6 = scalar_select 0, %s5, %s3
  $region1: #{tpu_custom_call.1} parent=0
    #allocation2 [shape = 'u8[8192]{0}', space=vmem, size = 0x2000, scoped, tag = 'input window, operand 0, single buffered']
    #allocation3 [shape = 's32[1]{0}', space=sflag, size = 0x4, scoped, tag = 'scoped memory for tpu_custom_call.1']
    #allocation4 [shape = 's32[1]{0}', space=sflag, size = 0x4, scoped, tag = 'scoped memory for tpu_custom_call.1']
    #allocation5 [shape = 'u8[8192]{0}', space=vmem, size = 0x2000, scoped, tag = 'input window, operand 1, single buffered']
    #allocation6 [shape = 's32[1]{0}', space=sflag, size = 0x4, scoped, tag = 'scoped memory for tpu_custom_call.1']
    #allocation7 [shape = 'u8[4096]{0}', space=vmem, size = 0x1000, scoped, tag = 'output window, operand 0, single buffered']
    %7 = vsyncpa [#allocation3], 0
    %8 = vsyncpa [#allocation6], 0
    %9 = vsyncpa [#allocation4], 0
    // Predicated region
    $region2: #{tpu_custom_call.1} parent=1 // pred_check
      _
    $region3: #{tpu_custom_call.1} parent=1 // pred_check_branch
      %11 = sbr.rel (0) target = $region5
    $region4: #{tpu_custom_call.1} parent=1 // pred_region
      %13 = vsyncadd [#allocation3], 0
      %s14 = sshll.u32 %s0, 4
      %s15 = int_to_ptr.hbm [resolvable:$true] %s14
      %s16 = sshll.u32 [#allocation2], 4
      %s17 = int_to_ptr.vmem [resolvable:$true] %s16
      %22 = dma.hbm_to_vmem [thread:$0]  %s15, 256, %s17, [#allocation3], 128, 128, 8
    $region5: #{tpu_custom_call.1} parent=1 // pred_fallthru
      _
    // Predicated region
    $region6: #{tpu_custom_call.1} parent=1 // pred_check
      _
    $region7: #{tpu_custom_call.1} parent=1 // pred_check_branch
      %24 = sbr.rel (0) target = $region9
    $region8: #{tpu_custom_call.1} parent=1 // pred_region
      %26 = vsyncadd [#allocation6], 0
      %s27 = sshll.u32 %s1, 4
      %s28 = int_to_ptr.hbm [resolvable:$true] %s27
      %s29 = sshll.u32 [#allocation5], 4
      %s30 = int_to_ptr.vmem [resolvable:$true] %s29
      %35 = dma.hbm_to_vmem [thread:$0]  %s28, 256, %s30, [#allocation6], 128, 128, 8
    $region9: #{tpu_custom_call.1} parent=1 // pred_fallthru
      _
    // Predicated region
    $region10: #{tpu_custom_call.1} parent=1 // pred_check
      _
    $region11: #{tpu_custom_call.1} parent=1 // pred_check_branch
      %37 = sbr.rel (0) target = $region13
    $region12: #{tpu_custom_call.1} parent=1 // pred_region
      %39 = dma.done [#allocation3], 256
    $region13: #{tpu_custom_call.1} parent=1 // pred_fallthru
      _
    // Predicated region
    $region14: #{tpu_custom_call.1} parent=1 // pred_check
      _
    $region15: #{tpu_custom_call.1} parent=1 // pred_check_branch
      %41 = sbr.rel (0) target = $region17
    $region16: #{tpu_custom_call.1} parent=1 // pred_region
      %43 = dma.done [#allocation6], 256
    $region17: #{tpu_custom_call.1} parent=1 // pred_fallthru
      _
    %v44 = vld [vmem:[#allocation2] sm:$0xff]
    %v45 = vld [vmem:[#allocation2 + $0x8] sm:$0xff]
    %v46 = vld [vmem:[#allocation5] sm:$0xff]
    %v47 = vld [vmem:[#allocation5 + $0x8] sm:$0xff]
    %vm48 = vcmask 261120
    %v49 = vsel %vm48, %v44, -inf
    %50 = vmax.xlane.f32.xlu0 %v49
    %v51 = vpop.xlane.xlu0 %50
    %v52 = vsel %vm48, %v45, -inf
    %53 = vmax.xlane.f32.xlu0 %v52
    %v54 = vpop.xlane.xlu0 %53
    %v55 = vsub.f32 %v44, %v51
    %v56 = vsub.f32 %v45, %v54
    %v57 = vmul.f32 %v55, 1.442695
    %v58 = vpow.pop %v57
    %v59 = vmul.f32 %v56, 1.442695
    %v60 = vpow.pop %v59
    %v61 = vsel %vm48, %v58, 0.0
    %62 = vadd.xlane.f32.xlu0 %v61
    %v63 = vpop.xlane.xlu0 %62
    %v64 = vsel %vm48, %v60, 0.0
    %65 = vadd.xlane.f32.xlu0 %v64
    %v66 = vpop.xlane.xlu0 %65
    %v67 = vrcp.pop %v63
    %v68 = vrcp.pop %v66
    %v69 = vmul.f32 %v58, %v67
    %v70 = vmul.f32 %v60, %v68
    %v71 = vmax.f32 %v69, 0.0001
    %v72 = vmax.f32 %v70, 0.0001
    %v73 = vmin.f32 %v71, 1.0
    %v74 = vmin.f32 %v72, 1.0
    %v75 = vlog2.pop %v63
    %v76 = vmul.f32 %v75, 0.6931472
    %v77 = vlog2.pop %v66
    %v78 = vmul.f32 %v77, 0.6931472
    %v79 = vsub.f32 %v55, %v76
    %v80 = vsub.f32 %v56, %v78
    %v81 = vmax.f32 %v79, -9.2103405
    %v82 = vmax.f32 %v80, -9.2103405
    %v83 = vmin.f32 %v81, 0.0
    %v84 = vmin.f32 %v82, 0.0
    %v85 = vsub.f32 1.0, %v73
    %v86 = vsub.f32 1.0, %v74
    %v87 = vmul.f32 %v85, %v85
    %v88 = vmul.f32 %v86, %v86
    %v89 = vsub.f32 0.0, %v87
    %v90 = vsub.f32 0.0, %v88
    %v91 = vmul.f32 %v89, %v83
    %v92 = vmul.f32 %v90, %v84
    %v93 = vmul.f32 %v91, %v46
    %v94 = vmul.f32 %v92, %v47
    %v95 = vsel %vm48, %v93, 0.0
    %v96 = vsel %vm48, %v94, 0.0
    %v97 = vadd.f32 %v95, %v96
    %98 = vadd.xlane.f32.xlu0 %v97
    %v99 = vpop.xlane.xlu0 %98
    %v100 = vrot.slane %v99, 4
    %v101 = vadd.f32 %v99, %v100
    %v102 = vrot.slane %v101, 2
    %v103 = vadd.f32 %v101, %v102
    %v104 = vrot.slane %v103, 1
    %v105 = vadd.f32 %v103, %v104
    %s106 = vtos %v105
    %v107 = vstv %s106
    %v108 = vadd.f32 %v107, 0.0
    %109 = vst [vmem:[#allocation7] sm:$0xff] %v108
    // Predicated region
    $region18: #{tpu_custom_call.1} parent=1 // pred_check
      _
    $region19: #{tpu_custom_call.1} parent=1 // pred_check_branch
      %111 = sbr.rel (0) target = $region21
    $region20: #{tpu_custom_call.1} parent=1 // pred_region
      %113 = vsyncadd [#allocation4], 0
      %s115 = sshll.u32 [#allocation7], 4
      %s116 = int_to_ptr.vmem [resolvable:$true] %s115
      %s117 = sshll.u32 %s2, 4
      %s118 = int_to_ptr.hbm [resolvable:$true] %s117
      %120 = dma.vmem_to_hbm [thread:$0]  %s116, 128, %s118, [#allocation4]
    $region21: #{tpu_custom_call.1} parent=1 // pred_fallthru
      _
    // Predicated region
    $region22: #{tpu_custom_call.1} parent=1 // pred_check
      _
    $region23: #{tpu_custom_call.1} parent=1 // pred_check_branch
      %122 = sbr.rel (0) target = $region25
    $region24: #{tpu_custom_call.1} parent=1 // pred_region
      %124 = dma.done [#allocation4], 128
    $region25: #{tpu_custom_call.1} parent=1 // pred_fallthru
      _
    %125 = vsyncpa [#allocation3], 1
    %126 = vsyncpa [#allocation6], 1
    %127 = vsyncpa [#allocation4], 1

</llo_original>
